<compile_context>
chip_gen: v5e
topology: v5e:2x2
jax: 0.10.0
libtpu: 0.0.40
codegen_flags: <defaults>
</compile_context>

<pallas_src>
import math
from functools import partial

import jax
import jax.numpy as jnp
from jax.experimental import pallas as pl
from jax.experimental.pallas import tpu as pltpu


def _build_pe_table(d_model: int, max_seq_len: int) -> jnp.ndarray:
    """Exactly reproduce the PyTorch __init__ PE buffer (float32).

    For column j (matching the given PyTorch loop, NOT the canonical paper
    formula for odd columns):
      j even: pe[pos, j] = sin(pos / 10000 ** (2*j / d_model))
      j odd : pe[pos, j] = cos(pos / 10000 ** (2*j / d_model))
    """
    pos = jnp.arange(max_seq_len, dtype=jnp.float32)[:, None]        # (L, 1)
    j = jnp.arange(d_model, dtype=jnp.float32)[None, :]              # (1, D)
    denom = jnp.power(jnp.float32(10000.0), 2.0 * j / d_model)       # (1, D)
    angle = pos / denom                                              # (L, D)
    even_mask = (jnp.arange(d_model) % 2 == 0)[None, :]
    pe = jnp.where(even_mask, jnp.sin(angle), jnp.cos(angle))
    return pe.astype(jnp.float32)


def _pos_enc_kernel(x_ref, pe_ref, o_ref, *, scale):
    # x_ref : (Bt, S*D)   lane-dense row tile
    # pe_ref: (1,  S*D)   broadcast over the Bt rows (each row holds all S
    #                     positions, so the flattened PE pattern matches 1:1)
    # o_ref : (Bt, S*D)
    o_ref[...] = x_ref[...] * scale + pe_ref[...]


def _pick_row_tile(batch: int, row_bytes: int, max_tile_bytes: int) -> int:
    """Largest row tile: whole batch if it fits, else the biggest multiple of 8
    that divides `batch` and fits the per-tile byte budget (the second-to-last
    block dim must be a multiple of 8 or equal the full extent)."""
    if batch * row_bytes <= max_tile_bytes:
        return batch
    max_rows = max(1, max_tile_bytes // row_bytes)
    best = 0
    for cand in range(8, max_rows + 1, 8):
        if batch % cand == 0:
            best = cand
    return best if best > 0 else batch  # fallback: single block


def positional_encoder(x: jnp.ndarray, pe_table: jnp.ndarray) -> jnp.ndarray:
    """x: (B, S, D) float32; pe_table: (max_seq_len, D) float32."""
    B, S, D = x.shape
    N = S * D
    scale = float(math.sqrt(D))

    # Layout plumbing in the wrapper (no compute): lane-dense 2D views.
    x2 = x.reshape(B, N)
    pe2 = pe_table[:S, :].reshape(1, N)

    itemsize = x2.dtype.itemsize
    row_bytes = N * itemsize
    # ~2 MiB of x per grid step -> double-buffered x + out stays ~8 MiB,
    # comfortably inside even v5e's 16 MiB scoped default and v7x's 64 MiB
    # physical VMEM, while being large enough to hide per-step overhead.
    bt = _pick_row_tile(B, row_bytes, max_tile_bytes=2 << 20)
    grid = (B // bt,)

    cost = pl.CostEstimate(
        flops=2 * B * N,                       # one mul + one add per element
        transcendentals=0,
        bytes_accessed=2 * B * N * itemsize + N * pe2.dtype.itemsize,
    )

    out2 = pl.pallas_call(
        partial(_pos_enc_kernel, scale=scale),
        out_shape=jax.ShapeDtypeStruct((B, N), x.dtype),
        grid_spec=pltpu.PrefetchScalarGridSpec(
            num_scalar_prefetch=0,
            grid=grid,
            in_specs=[
                pl.BlockSpec((bt, N), lambda i: (i, 0)),   # x row tile
                pl.BlockSpec((1, N), lambda i: (0, 0)),    # pe: constant block,
                                                           # reused across steps
            ],
            out_specs=pl.BlockSpec((bt, N), lambda i: (i, 0)),
        ),
        compiler_params=pltpu.CompilerParams(
            dimension_semantics=("parallel",),
            vmem_limit_bytes=48 * 1024 * 1024,  # > 16/32 MiB defaults, < 64 MiB v7x
        ),
        cost_estimate=cost,
    )(x2, pe2)

    return out2.reshape(B, S, D)


def positional_encoder_ref(x: jnp.ndarray, pe_table: jnp.ndarray) -> jnp.ndarray:
    """Pure-JAX reference mirroring the PyTorch forward."""
    B, S, D = x.shape
    return x * math.sqrt(D) + pe_table[None, :S, :]


if __name__ == "__main__":
    d_model = 32
    max_seq_len = 151
    batch = 2
    seq = 8

    key = jax.random.PRNGKey(0)
    x = jax.random.normal(key, (batch, seq, d_model), dtype=jnp.float32)

    pe_table = _build_pe_table(d_model, max_seq_len)

    out = positional_encoder(x, pe_table)
    out = jax.block_until_ready(out)

    ref = positional_encoder_ref(x, pe_table)
    assert out.shape == (batch, seq, d_model)
    assert jnp.allclose(out, ref, atol=1e-5, rtol=1e-5), "mismatch vs reference"

    print("KERNEL_OK")
</pallas_src>

<mosaic_0001>
module attributes {stable_mosaic.version = 11 : i64} {
  func.func @_pos_enc_kernel(%arg0: i32, %arg1: memref<2x256xf32, #tpu.memory_space<vmem>>, %arg2: memref<1x256xf32, #tpu.memory_space<vmem>>, %arg3: memref<2x256xf32, #tpu.memory_space<vmem>>) attributes {dimension_semantics = [#tpu.dimension_semantics<parallel>], iteration_bounds = array<i64: 1>, scalar_prefetch = 0 : i64, scratch_operands = 0 : i64, tpu.core_type = #tpu.core_type<tc>, window_params = [{transform_indices = @transform_0, window_bounds = array<i64: 2, 256>}, {pipeline_mode = #tpu.pipeline_mode<synchronous>, transform_indices = @transform_1, window_bounds = array<i64: 1, 256>}, {transform_indices = @transform_2, window_bounds = array<i64: 2, 256>}]} {
    %c0 = arith.constant 0 : index
    %c0_0 = arith.constant 0 : index
    %0 = vector.load %arg1[%c0, %c0_0] : memref<2x256xf32, #tpu.memory_space<vmem>>, vector<2x256xf32>
    %cst = arith.constant 5.65685415 : f32
    %1 = vector.broadcast %cst : f32 to vector<2x256xf32>
    %2 = arith.mulf %0, %1 : vector<2x256xf32>
    %c0_1 = arith.constant 0 : index
    %c0_2 = arith.constant 0 : index
    %3 = vector.load %arg2[%c0_1, %c0_2] : memref<1x256xf32, #tpu.memory_space<vmem>>, vector<1x256xf32>
    %4 = vector.broadcast %3 : vector<1x256xf32> to vector<2x256xf32>
    %5 = arith.addf %2, %4 : vector<2x256xf32>
    %c0_3 = arith.constant 0 : index
    %c0_4 = arith.constant 0 : index
    %6 = vector.load %arg3[%c0_3, %c0_4] : memref<2x256xf32, #tpu.memory_space<vmem>>, vector<2x256xf32>
    tpu.vector_store %arg3[%c0_3, %c0_4], %5 {strides = array<i32>} : memref<2x256xf32, #tpu.memory_space<vmem>>, vector<2x256xf32>,
    return
  }
  func.func @transform_0(%arg0: i32) -> (i32, i32) {
    %c0_i32 = arith.constant 0 : i32
    %c0_i32_0 = arith.constant 0 : i32
    return %arg0, %c0_i32 : i32, i32
  }
  func.func @transform_1(%arg0: i32) -> (i32, i32) {
    %c0_i32 = arith.constant 0 : i32
    %c0_i32_0 = arith.constant 0 : i32
    %c0_i32_1 = arith.constant 0 : i32
    return %c0_i32, %c0_i32_0 : i32, i32
  }
  func.func @transform_2(%arg0: i32) -> (i32, i32) {
    %c0_i32 = arith.constant 0 : i32
    %c0_i32_0 = arith.constant 0 : i32
    return %arg0, %c0_i32 : i32, i32
  }
}

</mosaic_0001>

<llo_original>
// kernel: tpu_custom_call.1
$region0: #{tpu_custom_call.1}
  #allocation0 [shape = 'u32[]', space=smem, size = 0x4, offset = 0x4, fixed_abs, tag = 'smem constant byte address 0x4 - core index']
  #allocation1 [shape = 'u32[72,128]{1,0:T(1,128)}', space=vmem, size = 0x9000, scoped, tag = 'internal scratch']
  %s0 = inlined_call_operand.hbm [shape: f32[2,256], index: 0, kind: input, shape index: {}]
  %s1 = inlined_call_operand.hbm [shape: f32[1,256], index: 1, kind: input, shape index: {}]
  %s2 = inlined_call_operand.hbm [shape: f32[2,256], index: 2, kind: output, shape index: {}]
  %s3 = sld [smem:[#allocation0]]
  $region26: #{tpu_custom_call.1} parent=0
    _
  %s5 = ssub.s32 1, %s3
  %s6 = scalar_select 0, %s5, %s3
  $region1: #{tpu_custom_call.1} parent=0
    #allocation2 [shape = 'u8[2048]{0}', space=vmem, size = 0x800, scoped, tag = 'input window, operand 0, single buffered']
    #allocation3 [shape = 's32[1]{0}', space=sflag, size = 0x4, scoped, tag = 'scoped memory for tpu_custom_call.1']
    #allocation4 [shape = 's32[1]{0}', space=sflag, size = 0x4, scoped, tag = 'scoped memory for tpu_custom_call.1']
    #allocation5 [shape = 'u8[1024]{0}', space=vmem, size = 0x400, scoped, tag = 'input window, operand 1, single buffered']
    #allocation6 [shape = 's32[1]{0}', space=sflag, size = 0x4, scoped, tag = 'scoped memory for tpu_custom_call.1']
    #allocation7 [shape = 'u8[2048]{0}', space=vmem, size = 0x800, scoped, tag = 'output window, operand 0, single buffered']
    %7 = vsyncpa [#allocation3], 0
    %8 = vsyncpa [#allocation6], 0
    %9 = vsyncpa [#allocation4], 0
    // Predicated region
    $region2: #{tpu_custom_call.1} parent=1 // pred_check
      _
    $region3: #{tpu_custom_call.1} parent=1 // pred_check_branch
      %11 = sbr.rel (0) target = $region5
    $region4: #{tpu_custom_call.1} parent=1 // pred_region
      %13 = vsyncadd [#allocation3], 0
      %s15 = sshll.u32 %s0, 4
      %s16 = int_to_ptr.hbm [resolvable:$true] %s15
      %s17 = sshll.u32 [#allocation2], 4
      %s18 = int_to_ptr.vmem [resolvable:$true] %s17
      %20 = dma.hbm_to_vmem [thread:$0]  %s16, 64, %s18, [#allocation3]
    $region5: #{tpu_custom_call.1} parent=1 // pred_fallthru
      _
    // Predicated region
    $region6: #{tpu_custom_call.1} parent=1 // pred_check
      _
    $region7: #{tpu_custom_call.1} parent=1 // pred_check_branch
      %22 = sbr.rel (0) target = $region9
    $region8: #{tpu_custom_call.1} parent=1 // pred_region
      %24 = vsyncadd [#allocation6], 0
      %s26 = sshll.u32 %s1, 4
      %s27 = int_to_ptr.hbm [resolvable:$true] %s26
      %s28 = sshll.u32 [#allocation5], 4
      %s29 = int_to_ptr.vmem [resolvable:$true] %s28
      %31 = dma.hbm_to_vmem [thread:$0]  %s27, 32, %s29, [#allocation6]
    $region9: #{tpu_custom_call.1} parent=1 // pred_fallthru
      _
    // Predicated region
    $region10: #{tpu_custom_call.1} parent=1 // pred_check
      _
    $region11: #{tpu_custom_call.1} parent=1 // pred_check_branch
      %33 = sbr.rel (0) target = $region13
    $region12: #{tpu_custom_call.1} parent=1 // pred_region
      %35 = dma.done [#allocation3], 64
    $region13: #{tpu_custom_call.1} parent=1 // pred_fallthru
      _
    // Predicated region
    $region14: #{tpu_custom_call.1} parent=1 // pred_check
      _
    $region15: #{tpu_custom_call.1} parent=1 // pred_check_branch
      %37 = sbr.rel (0) target = $region17
    $region16: #{tpu_custom_call.1} parent=1 // pred_region
      %39 = dma.done [#allocation6], 32
    $region17: #{tpu_custom_call.1} parent=1 // pred_fallthru
      _
    %v40 = vld [vmem:[#allocation2] sm:$0xf]
    %v41 = vmul.f32 %v40, 5.656854
    %v42 = vld [vmem:[#allocation5] sm:$0x3]
    %v44 = vperm.slane %v42, 0
    %v45 = vperm.slane %v42, 1
    %v46 = vrot.slane %v45, 6
    %vm47 = vcmask 1041408
    %v48 = vsel %vm47, %v44, %v46
    %v50 = vadd.f32 %v41, %v48
    %51 = vst [vmem:[#allocation7] sm:$0xf] %v50
    // Predicated region
    $region18: #{tpu_custom_call.1} parent=1 // pred_check
      _
    $region19: #{tpu_custom_call.1} parent=1 // pred_check_branch
      %53 = sbr.rel (0) target = $region21
    $region20: #{tpu_custom_call.1} parent=1 // pred_region
      %55 = vsyncadd [#allocation4], 0
      %s57 = sshll.u32 [#allocation7], 4
      %s58 = int_to_ptr.vmem [resolvable:$true] %s57
      %s59 = sshll.u32 %s2, 4
      %s60 = int_to_ptr.hbm [resolvable:$true] %s59
      %62 = dma.vmem_to_hbm [thread:$0]  %s58, 64, %s60, [#allocation4]
    $region21: #{tpu_custom_call.1} parent=1 // pred_fallthru
      _
    // Predicated region
    $region22: #{tpu_custom_call.1} parent=1 // pred_check
      _
    $region23: #{tpu_custom_call.1} parent=1 // pred_check_branch
      %64 = sbr.rel (0) target = $region25
    $region24: #{tpu_custom_call.1} parent=1 // pred_region
      %66 = dma.done [#allocation4], 64
    $region25: #{tpu_custom_call.1} parent=1 // pred_fallthru
      _
    %67 = vsyncpa [#allocation3], 1
    %68 = vsyncpa [#allocation6], 1
    %69 = vsyncpa [#allocation4], 1

</llo_original>
